<compile_context>
chip_gen: v7x
topology: tpu7x:2x2x1
jax: 0.10.0
libtpu: 0.0.40
codegen_flags: <defaults>
</compile_context>

<pallas_src>
import functools

import jax
import jax.numpy as jnp
from jax.experimental import pallas as pl
from jax.experimental.pallas import tpu as pltpu


_VMEM = pl.BlockSpec(memory_space=pltpu.MemorySpace.VMEM)
_NEG_INF = -1e30


def _round_up(x, m):
    return (x + m - 1) // m * m


# ---------------------------------------------------------------------------
# Fused kernel: embedding gather + fused conv branches + max-pool + MLP head
# ---------------------------------------------------------------------------
def _fused_kernel(B, L, maxks, tok_ref, emb_ref, wcat_ref, bconv_ref,
                  mask_ref, w1_ref, b1_ref, w2_ref, b2_ref, o_ref):
    BLP = tok_ref.shape[0]                 # padded token rows (multiple of 32)
    V, D = emb_ref.shape
    KTp = wcat_ref.shape[1]                # lane-padded conv output width
    BL = B * L

    # ---- embedding lookup: bf16 one-hot (BLP,V) @ table (V,D); f32 acc.
    tok = tok_ref[...]                                              # (BLP,1) i32
    vid = jax.lax.broadcasted_iota(jnp.int32, (BLP, V), 1)
    onehot = (tok == vid).astype(jnp.bfloat16)                      # 0/1 exact
    x = jnp.dot(onehot, emb_ref[...],
                preferred_element_type=jnp.float32)                 # (BLP, D) f32

    # ---- all conv branches in ONE matmul: lane-concatenate the maxks shifted
    # windows so the contraction depth is maxks*D (=128 here, fills the MXU).
    xcat = jnp.concatenate([x[i:i + BL, :] for i in range(maxks)],
                           axis=1).astype(jnp.bfloat16)             # (BL, maxks*D)
    s = jnp.dot(xcat, wcat_ref[...],
                preferred_element_type=jnp.float32)                 # (BL, KTp) f32

    # ---- static additive mask (windows crossing the sequence end and
    # cross-batch contamination), max over time, then bias + ReLU
    # (bias const over t and ReLU monotone -> identical to ReLU-then-max).
    s = s + mask_ref[...]
    pooled = jnp.max(s.reshape(B, L, KTp), axis=1) + bconv_ref[...]
    pooled = jnp.maximum(pooled, 0.0)                               # (B, KTp) f32

    # ---- MLP head: Linear+ReLU, Linear+log-softmax (lane-dense 128 widths).
    h = jnp.dot(pooled.astype(jnp.bfloat16), w1_ref[...],
                preferred_element_type=jnp.float32) + b1_ref[...]
    h = jnp.maximum(h, 0.0)
    logits = jnp.dot(h.astype(jnp.bfloat16), w2_ref[...],
                     preferred_element_type=jnp.float32) + b2_ref[...]
    m = jnp.max(logits, axis=1, keepdims=True)
    lse = jnp.log(jnp.sum(jnp.exp(logits - m), axis=1, keepdims=True)) + m
    o_ref[...] = logits - lse                                       # (B, Cp)


# ---------------------------------------------------------------------------
# Wrapper: single grid-less pallas_call for the whole forward pass
# ---------------------------------------------------------------------------
def model_cnn_forward(tokens, params):
    B, L = tokens.shape
    emb = params["emb"]                  # (V, D)              bf16
    w_cat = params["w_conv"]             # (maxks*D, KTp)      bf16
    b_conv = params["b_conv"]            # (1, KTp)            f32
    ks_col = params["ks_col"]            # (1, KTp)            i32
    w_ff, b_ff = params["w_ff"], params["b_ff"]      # (KTp,Hp) bf16, (1,Hp) f32
    w_out, b_out = params["w_out"], params["b_out"]  # (Hp,Cp)  bf16, (1,Cp) f32
    maxks = params["max_ks"]
    C = params["n_classes"]

    V, D = emb.shape
    KTp = w_cat.shape[1]
    Hp = w_ff.shape[1]
    Cp = w_out.shape[1]
    BL = B * L

    # Conv with ks > L has no valid window (whole column would be masked).
    assert L >= maxks, "sequence length must be >= max kernel size"

    # Flatten tokens to (B*L,1) and pad rows to a multiple of 32 so the one-hot
    # LHS and shifted slices are tile-aligned (padded windows are masked out).
    BLP = _round_up(BL + maxks - 1, 32)
    tok_flat = jnp.concatenate(
        [tokens.reshape(BL, 1).astype(jnp.int32),
         jnp.zeros((BLP - BL, 1), jnp.int32)], axis=0)

    # Static additive time mask, precomputed outside the kernel:
    # row b*L+t, col k is 0 iff t <= L - ks_k, else -1e30.
    t_idx = jnp.arange(L, dtype=jnp.int32)[:, None]                 # (L, 1)
    n_valid = (L - ks_col + 1).astype(jnp.int32)                    # (1, KTp)
    mask = jnp.where(t_idx < n_valid, 0.0, _NEG_INF).astype(jnp.float32)
    mask = jnp.tile(mask, (B, 1))                                   # (BL, KTp)

    flops = 2 * (BLP * V * D + BL * (maxks * D) * KTp + B * KTp * Hp + B * Hp * Cp)
    bytes_accessed = (tok_flat.nbytes + emb.nbytes + w_cat.nbytes + b_conv.nbytes
                      + mask.nbytes + w_ff.nbytes + b_ff.nbytes
                      + w_out.nbytes + b_out.nbytes + B * Cp * 4)

    kernel = functools.partial(_fused_kernel, B, L, maxks)
    out_pad = pl.pallas_call(
        kernel,
        out_shape=jax.ShapeDtypeStruct((B, Cp), jnp.float32),
        in_specs=[_VMEM] * 9,
        out_specs=_VMEM,
        cost_estimate=pl.CostEstimate(flops=flops,
                                      transcendentals=B * Cp + B,
                                      bytes_accessed=bytes_accessed),
    )(tok_flat, emb, w_cat, b_conv, mask, w_ff, b_ff, w_out, b_out)
    return out_pad[:, :C]                # lane-dense store; slice padding away


# ---------------------------------------------------------------------------
# Deterministic parameter construction (synthetic, no checkpoint load),
# packed into lane-padded (128-wide) fused layouts.
# ---------------------------------------------------------------------------
def init_params(key, vocab, dim_emb, kernel_num, kernel_sizes, dim_hid,
                n_classes, lane=128):
    ks_list = list(kernel_sizes)
    nb = len(ks_list)
    maxks = max(ks_list)
    KT = kernel_num * nb
    KTp = _round_up(KT, lane)
    Hp = _round_up(dim_hid, lane)
    Cp = _round_up(n_classes, lane)
    KIN = maxks * dim_emb

    keys = jax.random.split(key, 1 + 2 * nb + 4)
    it = iter(keys)

    emb = jax.random.normal(next(it), (vocab, dim_emb), jnp.float32) * 0.1

    # Pack all conv branches: rows = shift*D + d, cols = branch*K + k.
    # PyTorch Conv2d(1, K, (ks, D)) weight layout is (K, 1, ks, D).
    w_cat = jnp.zeros((KIN, KTp), jnp.float32)
    b_conv = jnp.zeros((1, KTp), jnp.float32)
    ks_col = jnp.ones((1, KTp), jnp.int32)        # padded cols: ks=1 -> never masked
    for bi, ks in enumerate(ks_list):
        w4 = jax.random.normal(next(it), (kernel_num, 1, ks, dim_emb),
                               jnp.float32) * 0.1
        b = jax.random.normal(next(it), (1, kernel_num), jnp.float32) * 0.01
        w = jnp.transpose(w4[:, 0], (1, 2, 0)).reshape(ks * dim_emb, kernel_num)
        cols = slice(bi * kernel_num, (bi + 1) * kernel_num)
        w_cat = w_cat.at[:ks * dim_emb, cols].set(w)
        b_conv = b_conv.at[:, cols].set(b)
        ks_col = ks_col.at[:, cols].set(ks)

    w_ff = jnp.zeros((KTp, Hp), jnp.float32)
    w_ff = w_ff.at[:KT, :dim_hid].set(
        jax.random.normal(next(it), (KT, dim_hid), jnp.float32) * 0.1)
    b_ff = jnp.zeros((1, Hp), jnp.float32)
    b_ff = b_ff.at[:, :dim_hid].set(
        jax.random.normal(next(it), (1, dim_hid), jnp.float32) * 0.01)

    w_out = jnp.zeros((Hp, Cp), jnp.float32)
    w_out = w_out.at[:dim_hid, :n_classes].set(
        jax.random.normal(next(it), (dim_hid, n_classes), jnp.float32) * 0.1)
    # Padded class columns get bias=-1e30 so they vanish from log-softmax.
    b_out = jnp.full((1, Cp), _NEG_INF, jnp.float32)
    b_out = b_out.at[:, :n_classes].set(
        jax.random.normal(next(it), (1, n_classes), jnp.float32) * 0.01)

    return {
        "emb": emb.astype(jnp.bfloat16),          # MXU operands in bf16
        "w_conv": w_cat.astype(jnp.bfloat16),
        "b_conv": b_conv,                          # biases / masks stay f32/i32
        "ks_col": ks_col,
        "w_ff": w_ff.astype(jnp.bfloat16),
        "b_ff": b_ff,
        "w_out": w_out.astype(jnp.bfloat16),
        "b_out": b_out,
        "n_classes": n_classes,
        "kernel_num": kernel_num,
        "kernel_sizes": tuple(ks_list),
        "max_ks": maxks,
        "dim_emb": dim_emb,
    }


# ---------------------------------------------------------------------------
# Pure-JAX reference (same bf16-rounded weights, f32 math) for correctness
# ---------------------------------------------------------------------------
def reference_forward(tokens, params):
    emb = params["emb"].astype(jnp.float32)[tokens]            # (B, L, D)
    B, L, D = emb.shape
    w_cat = params["w_conv"].astype(jnp.float32)               # (maxks*D, KTp)
    K = params["kernel_num"]
    ks_list = params["kernel_sizes"]
    KT = K * len(ks_list)
    cols = []
    for k in range(KT):
        ks = ks_list[k // K]
        T = L - ks + 1
        s = jnp.zeros((B, T), jnp.float32)
        for i in range(ks):
            s = s + emb[:, i:i + T, :] @ w_cat[i * D:(i + 1) * D, k]
        s = jnp.maximum(s + params["b_conv"][0, k], 0.0)       # ReLU(conv+bias)
        cols.append(jnp.max(s, axis=1))                        # max_pool1d
    pooled = jnp.stack(cols, axis=1)                           # (B, KT)
    h = jnp.maximum(pooled @ params["w_ff"].astype(jnp.float32)[:KT, :]
                    + params["b_ff"], 0.0)                     # (B, Hp)
    logits = h @ params["w_out"].astype(jnp.float32) + params["b_out"]
    logits = logits[:, :params["n_classes"]]
    return jax.nn.log_softmax(logits, axis=1)


# ---------------------------------------------------------------------------
if __name__ == "__main__":
    B, L = 2, 8                 # batch, sequence length
    VOCAB, DIM_EMB = 50, 32     # embedding table (synthetic load_emb)
    KERNEL_NUM = 8
    KERNEL_SIZES = (2, 3, 4)
    DIM_HID = 32
    N_CLASSES = 4

    root = jax.random.PRNGKey(0)
    k_tok, k_par = jax.random.split(root)

    tokens = jax.random.randint(k_tok, (B, L), 0, VOCAB, dtype=jnp.int32)
    params = init_params(k_par, VOCAB, DIM_EMB, KERNEL_NUM, KERNEL_SIZES,
                         DIM_HID, N_CLASSES)

    out = jax.block_until_ready(model_cnn_forward(tokens, params))  # (B, C)

    assert out.shape == (B, N_CLASSES)
    # log-softmax rows should sum (in prob space) to ~1
    assert bool(jnp.all(jnp.abs(jnp.sum(jnp.exp(out), axis=1) - 1.0) < 1e-4))
    # match the pure-JAX reference (bf16 MXU operands -> loose tolerance)
    ref = reference_forward(tokens, params)
    assert bool(jnp.allclose(out, ref, atol=2e-2, rtol=0.0))

    print("KERNEL_OK")
</pallas_src>

<mosaic_0001>
module attributes {stable_mosaic.version = 11 : i64} {
  func.func @_fused_kernel(%arg0: memref<32x1xi32, #tpu.memory_space<vmem>>, %arg1: memref<50x32xbf16, #tpu.memory_space<vmem>>, %arg2: memref<128x128xbf16, #tpu.memory_space<vmem>>, %arg3: memref<1x128xf32, #tpu.memory_space<vmem>>, %arg4: memref<16x128xf32, #tpu.memory_space<vmem>>, %arg5: memref<128x128xbf16, #tpu.memory_space<vmem>>, %arg6: memref<1x128xf32, #tpu.memory_space<vmem>>, %arg7: memref<128x128xbf16, #tpu.memory_space<vmem>>, %arg8: memref<1x128xf32, #tpu.memory_space<vmem>>, %arg9: memref<2x128xf32, #tpu.memory_space<vmem>>) attributes {dimension_semantics = [], scalar_prefetch = 0 : i64, scratch_operands = 0 : i64, tpu.core_type = #tpu.core_type<tc>} {
    %c0 = arith.constant 0 : index
    %c0_0 = arith.constant 0 : index
    %0 = vector.load %arg0[%c0, %c0_0] : memref<32x1xi32, #tpu.memory_space<vmem>>, vector<32x1xi32>
    %1 = tpu.iota {dimensions = array<i32: 1>} : vector<32x50xi32>
    %2 = vector.broadcast %0 : vector<32x1xi32> to vector<32x50xi32>
    %3 = arith.cmpi eq, %2, %1 : vector<32x50xi32>
    %4 = arith.extui %3 : vector<32x50xi1> to vector<32x50xi32>
    %5 = arith.sitofp %4 : vector<32x50xi32> to vector<32x50xf32>
    %6 = arith.truncf %5 : vector<32x50xf32> to vector<32x50xbf16>
    %c0_1 = arith.constant 0 : index
    %c0_2 = arith.constant 0 : index
    %7 = vector.load %arg1[%c0_1, %c0_2] : memref<50x32xbf16, #tpu.memory_space<vmem>>, vector<50x32xbf16>
    %cst = arith.constant dense<0.000000e+00> : vector<32x32xf32>
    %8 = tpu.matmul %6, %7, %cst {dimension_numbers = #tpu.dot_dimension_numbers<[1], [0], [0], [1], [0, 0, 1, 1], [], []>} : vector<32x50xbf16>, vector<50x32xbf16>, vector<32x32xf32> -> vector<32x32xf32>
    %9 = vector.extract_strided_slice %8 {offsets = [0, 0], sizes = [16, 32], strides = [1, 1]} : vector<32x32xf32> to vector<16x32xf32>
    %10 = vector.extract_strided_slice %8 {offsets = [1, 0], sizes = [16, 32], strides = [1, 1]} : vector<32x32xf32> to vector<16x32xf32>
    %11 = vector.extract_strided_slice %8 {offsets = [2, 0], sizes = [16, 32], strides = [1, 1]} : vector<32x32xf32> to vector<16x32xf32>
    %12 = vector.extract_strided_slice %8 {offsets = [3, 0], sizes = [16, 32], strides = [1, 1]} : vector<32x32xf32> to vector<16x32xf32>
    %13 = tpu.concatenate %9, %10, %11, %12 in 1 : vector<16x32xf32>, vector<16x32xf32>, vector<16x32xf32>, vector<16x32xf32> -> vector<16x128xf32>
    %14 = arith.truncf %13 : vector<16x128xf32> to vector<16x128xbf16>
    %c0_3 = arith.constant 0 : index
    %c0_4 = arith.constant 0 : index
    %15 = vector.load %arg2[%c0_3, %c0_4] : memref<128x128xbf16, #tpu.memory_space<vmem>>, vector<128x128xbf16>
    %cst_5 = arith.constant dense<0.000000e+00> : vector<16x128xf32>
    %16 = tpu.matmul %14, %15, %cst_5 {dimension_numbers = #tpu.dot_dimension_numbers<[1], [0], [0], [1], [0, 0, 1, 1], [], []>} : vector<16x128xbf16>, vector<128x128xbf16>, vector<16x128xf32> -> vector<16x128xf32>
    %c0_6 = arith.constant 0 : index
    %c0_7 = arith.constant 0 : index
    %17 = vector.load %arg4[%c0_6, %c0_7] : memref<16x128xf32, #tpu.memory_space<vmem>>, vector<16x128xf32>
    %18 = arith.addf %16, %17 : vector<16x128xf32>
    %19 = vector.shape_cast %18 : vector<16x128xf32> to vector<2x8x128xf32>
    %cst_8 = arith.constant dense<0xFF800000> : vector<2x128xf32>
    %20 = vector.multi_reduction <maximumf>, %19, %cst_8 [1] : vector<2x8x128xf32> to vector<2x128xf32>
    %c0_9 = arith.constant 0 : index
    %c0_10 = arith.constant 0 : index
    %21 = vector.load %arg3[%c0_9, %c0_10] : memref<1x128xf32, #tpu.memory_space<vmem>>, vector<1x128xf32>
    %22 = vector.broadcast %21 : vector<1x128xf32> to vector<2x128xf32>
    %23 = arith.addf %20, %22 : vector<2x128xf32>
    %cst_11 = arith.constant 0.000000e+00 : f32
    %24 = vector.broadcast %cst_11 : f32 to vector<2x128xf32>
    %25 = arith.maximumf %23, %24 : vector<2x128xf32>
    %26 = arith.truncf %25 : vector<2x128xf32> to vector<2x128xbf16>
    %c0_12 = arith.constant 0 : index
    %c0_13 = arith.constant 0 : index
    %27 = vector.load %arg5[%c0_12, %c0_13] : memref<128x128xbf16, #tpu.memory_space<vmem>>, vector<128x128xbf16>
    %cst_14 = arith.constant dense<0.000000e+00> : vector<2x128xf32>
    %28 = tpu.matmul %26, %27, %cst_14 {dimension_numbers = #tpu.dot_dimension_numbers<[1], [0], [0], [1], [0, 0, 1, 1], [], []>} : vector<2x128xbf16>, vector<128x128xbf16>, vector<2x128xf32> -> vector<2x128xf32>
    %c0_15 = arith.constant 0 : index
    %c0_16 = arith.constant 0 : index
    %29 = vector.load %arg6[%c0_15, %c0_16] : memref<1x128xf32, #tpu.memory_space<vmem>>, vector<1x128xf32>
    %30 = vector.broadcast %29 : vector<1x128xf32> to vector<2x128xf32>
    %31 = arith.addf %28, %30 : vector<2x128xf32>
    %cst_17 = arith.constant 0.000000e+00 : f32
    %32 = vector.broadcast %cst_17 : f32 to vector<2x128xf32>
    %33 = arith.maximumf %31, %32 : vector<2x128xf32>
    %34 = arith.truncf %33 : vector<2x128xf32> to vector<2x128xbf16>
    %c0_18 = arith.constant 0 : index
    %c0_19 = arith.constant 0 : index
    %35 = vector.load %arg7[%c0_18, %c0_19] : memref<128x128xbf16, #tpu.memory_space<vmem>>, vector<128x128xbf16>
    %cst_20 = arith.constant dense<0.000000e+00> : vector<2x128xf32>
    %36 = tpu.matmul %34, %35, %cst_20 {dimension_numbers = #tpu.dot_dimension_numbers<[1], [0], [0], [1], [0, 0, 1, 1], [], []>} : vector<2x128xbf16>, vector<128x128xbf16>, vector<2x128xf32> -> vector<2x128xf32>
    %c0_21 = arith.constant 0 : index
    %c0_22 = arith.constant 0 : index
    %37 = vector.load %arg8[%c0_21, %c0_22] : memref<1x128xf32, #tpu.memory_space<vmem>>, vector<1x128xf32>
    %38 = vector.broadcast %37 : vector<1x128xf32> to vector<2x128xf32>
    %39 = arith.addf %36, %38 : vector<2x128xf32>
    %cst_23 = arith.constant dense<0xFF800000> : vector<2xf32>
    %40 = vector.multi_reduction <maximumf>, %39, %cst_23 [1] : vector<2x128xf32> to vector<2xf32>
    %41 = vector.shape_cast %40 : vector<2xf32> to vector<2x1xf32>
    %42 = vector.broadcast %41 : vector<2x1xf32> to vector<2x128xf32>
    %43 = arith.subf %39, %42 : vector<2x128xf32>
    %44 = math.exp %43 : vector<2x128xf32>
    %cst_24 = arith.constant dense<0.000000e+00> : vector<2xf32>
    %45 = vector.multi_reduction <add>, %44, %cst_24 [1] : vector<2x128xf32> to vector<2xf32>
    %46 = vector.shape_cast %45 : vector<2xf32> to vector<2x1xf32>
    %47 = math.log %46 : vector<2x1xf32>
    %48 = arith.addf %47, %41 : vector<2x1xf32>
    %49 = vector.broadcast %48 : vector<2x1xf32> to vector<2x128xf32>
    %50 = arith.subf %39, %49 : vector<2x128xf32>
    %c0_25 = arith.constant 0 : index
    %c0_26 = arith.constant 0 : index
    %51 = vector.load %arg9[%c0_25, %c0_26] : memref<2x128xf32, #tpu.memory_space<vmem>>, vector<2x128xf32>
    tpu.vector_store %arg9[%c0_25, %c0_26], %50 {strides = array<i32>} : memref<2x128xf32, #tpu.memory_space<vmem>>, vector<2x128xf32>,
    return
  }
}

</mosaic_0001>

<llo_original>
// kernel: tpu_custom_call.1
$region0: #{tpu_custom_call.1}
  #allocation0 [shape = 'u32[]', space=smem, size = 0x4, offset = 0x4, fixed_abs, tag = 'smem constant byte address 0x4 - core index']
  #allocation1 [shape = 'u32[144,128]{1,0:T(1,128)}', space=vmem, size = 0x12000, scoped, tag = 'internal scratch']
  %s0 = inlined_call_operand.vmem [shape: s32[32,1], index: 0, kind: input, shape index: {}]
  %s1 = inlined_call_operand.vmem [shape: bf16[50,32], index: 1, kind: input, shape index: {}]
  %s2 = inlined_call_operand.vmem [shape: bf16[128,128], index: 2, kind: input, shape index: {}]
  %s3 = inlined_call_operand.vmem [shape: f32[1,128], index: 3, kind: input, shape index: {}]
  %s4 = inlined_call_operand.vmem [shape: f32[16,128], index: 4, kind: input, shape index: {}]
  %s5 = inlined_call_operand.hbm [shape: bf16[128,128], index: 5, kind: input, shape index: {}]
  %s6 = inlined_call_operand.vmem [shape: f32[1,128], index: 6, kind: input, shape index: {}]
  %s7 = inlined_call_operand.hbm [shape: bf16[128,128], index: 7, kind: input, shape index: {}]
  %s8 = inlined_call_operand.vmem [shape: f32[1,128], index: 8, kind: input, shape index: {}]
  %s9 = inlined_call_operand.hbm [shape: f32[2,128], index: 9, kind: output, shape index: {}]
  %s10 = sld [smem:[#allocation0]]
  $region54: #{tpu_custom_call.1} parent=0
    _
  %s12 = ssub.s32 1, %s10
  %s13 = scalar_select 0, %s12, %s10
  $region1: #{tpu_custom_call.1} parent=0
    #allocation2 [shape = 'u8[32768]{0}', space=vmem, size = 0x8000, scoped, tag = 'input window, operand 5, single buffered']
    #allocation3 [shape = 's32[1]{0}', space=sflag, size = 0x4, scoped, tag = 'scoped memory for tpu_custom_call.1']
    #allocation4 [shape = 's32[1]{0}', space=sflag, size = 0x4, scoped, tag = 'scoped memory for tpu_custom_call.1']
    #allocation5 [shape = 'u8[32768]{0}', space=vmem, size = 0x8000, scoped, tag = 'input window, operand 7, single buffered']
    #allocation6 [shape = 's32[1]{0}', space=sflag, size = 0x4, scoped, tag = 'scoped memory for tpu_custom_call.1']
    #allocation7 [shape = 'u8[1024]{0}', space=vmem, size = 0x400, scoped, tag = 'output window, operand 0, single buffered']
    %14 = vsyncpa [#allocation3], 0
    %15 = vsyncpa [#allocation6], 0
    %16 = vsyncpa [#allocation4], 0
    // Predicated region
    $region2: #{tpu_custom_call.1} parent=1 // pred_check
      _
    $region3: #{tpu_custom_call.1} parent=1 // pred_check_branch
      %18 = sbr.rel (0) target = $region5
    $region4: #{tpu_custom_call.1} parent=1 // pred_region
      _
    $region5: #{tpu_custom_call.1} parent=1 // pred_fallthru
      _
    // Predicated region
    $region6: #{tpu_custom_call.1} parent=1 // pred_check
      _
    $region7: #{tpu_custom_call.1} parent=1 // pred_check_branch
      %20 = sbr.rel (0) target = $region9
    $region8: #{tpu_custom_call.1} parent=1 // pred_region
      _
    $region9: #{tpu_custom_call.1} parent=1 // pred_fallthru
      _
    // Predicated region
    $region10: #{tpu_custom_call.1} parent=1 // pred_check
      _
    $region11: #{tpu_custom_call.1} parent=1 // pred_check_branch
      %22 = sbr.rel (0) target = $region13
    $region12: #{tpu_custom_call.1} parent=1 // pred_region
      _
    $region13: #{tpu_custom_call.1} parent=1 // pred_fallthru
      _
    // Predicated region
    $region14: #{tpu_custom_call.1} parent=1 // pred_check
      _
    $region15: #{tpu_custom_call.1} parent=1 // pred_check_branch
      %24 = sbr.rel (0) target = $region17
    $region16: #{tpu_custom_call.1} parent=1 // pred_region
      _
    $region17: #{tpu_custom_call.1} parent=1 // pred_fallthru
      _
    // Predicated region
    $region18: #{tpu_custom_call.1} parent=1 // pred_check
      _
    $region19: #{tpu_custom_call.1} parent=1 // pred_check_branch
      %26 = sbr.rel (0) target = $region21
    $region20: #{tpu_custom_call.1} parent=1 // pred_region
      _
    $region21: #{tpu_custom_call.1} parent=1 // pred_fallthru
      _
    // Predicated region
    $region22: #{tpu_custom_call.1} parent=1 // pred_check
      _
    $region23: #{tpu_custom_call.1} parent=1 // pred_check_branch
      %28 = sbr.rel (0) target = $region25
    $region24: #{tpu_custom_call.1} parent=1 // pred_region
      %s30 = ssub.s32 1024, 1024
      %31 = vsyncadd [#allocation3], %s30
      %s32 = sshll.u32 [#allocation2], 4
      %s33 = int_to_ptr.vmem [resolvable:$true] %s32
      %38 = dma.hbm_to_vmem [thread:$0]  %s5, 1024, %s33, [#allocation3], 64, 64, 4
    $region25: #{tpu_custom_call.1} parent=1 // pred_fallthru
      _
    // Predicated region
    $region26: #{tpu_custom_call.1} parent=1 // pred_check
      _
    $region27: #{tpu_custom_call.1} parent=1 // pred_check_branch
      %40 = sbr.rel (0) target = $region29
    $region28: #{tpu_custom_call.1} parent=1 // pred_region
      _
    $region29: #{tpu_custom_call.1} parent=1 // pred_fallthru
      _
    // Predicated region
    $region30: #{tpu_custom_call.1} parent=1 // pred_check
      _
    $region31: #{tpu_custom_call.1} parent=1 // pred_check_branch
      %42 = sbr.rel (0) target = $region33
    $region32: #{tpu_custom_call.1} parent=1 // pred_region
      %s44 = ssub.s32 1024, 1024
      %45 = vsyncadd [#allocation6], %s44
      %s46 = sshll.u32 [#allocation5], 4
      %s47 = int_to_ptr.vmem [resolvable:$true] %s46
      %52 = dma.hbm_to_vmem [thread:$0]  %s7, 1024, %s47, [#allocation6], 64, 64, 4
    $region33: #{tpu_custom_call.1} parent=1 // pred_fallthru
      _
    // Predicated region
    $region34: #{tpu_custom_call.1} parent=1 // pred_check
      _
    $region35: #{tpu_custom_call.1} parent=1 // pred_check_branch
      %54 = sbr.rel (0) target = $region37
    $region36: #{tpu_custom_call.1} parent=1 // pred_region
      _
    $region37: #{tpu_custom_call.1} parent=1 // pred_fallthru
      _
    // Predicated region
    $region38: #{tpu_custom_call.1} parent=1 // pred_check
      _
    $region39: #{tpu_custom_call.1} parent=1 // pred_check_branch
      %56 = sbr.rel (0) target = $region41
    $region40: #{tpu_custom_call.1} parent=1 // pred_region
      %57 = dma.done [#allocation3], 1024
    $region41: #{tpu_custom_call.1} parent=1 // pred_fallthru
      _
    // Predicated region
    $region42: #{tpu_custom_call.1} parent=1 // pred_check
      _
    $region43: #{tpu_custom_call.1} parent=1 // pred_check_branch
      %59 = sbr.rel (0) target = $region45
    $region44: #{tpu_custom_call.1} parent=1 // pred_region
      %60 = dma.done [#allocation6], 1024
    $region45: #{tpu_custom_call.1} parent=1 // pred_fallthru
      _
    %v62 = vld [vmem:[%s0] sm:$0xff]
    %v63 = vld [vmem:[%s0 + $0x8] sm:$0xff]
    %v64 = vld [vmem:[%s0 + $0x10] sm:$0xff]
    %v65 = vld [vmem:[%s0 + $0x18] sm:$0xff]
    %v66 = vlaneseq
    %v67 = vand.u32 %v66, 127
    %68 = vset.pattern.permute.xlu0 0
    %69 = vperm.xlu0 %68, %v62
    %v70 = vpop.permute.xlu0 %69
    %71 = vset.pattern.permute.xlu0 0
    %72 = vperm.xlu0 %71, %v63
    %v73 = vpop.permute.xlu0 %72
    %74 = vset.pattern.permute.xlu0 0
    %75 = vperm.xlu0 %74, %v64
    %v76 = vpop.permute.xlu0 %75
    %77 = vset.pattern.permute.xlu0 0
    %78 = vperm.xlu0 %77, %v65
    %v79 = vpop.permute.xlu0 %78
    %vm80 = vcmp.eq.s32.totalorder %v70, %v67
    %vm81 = vcmp.eq.s32.totalorder %v73, %v67
    %vm82 = vcmp.eq.s32.totalorder %v76, %v67
    %vm83 = vcmp.eq.s32.totalorder %v79, %v67
    %v84 = vsel %vm80, 1, 0
    %v85 = vsel %vm81, 1, 0
    %v86 = vsel %vm82, 1, 0
    %v87 = vsel %vm83, 1, 0
    %v88 = vcvt.s32.f32 %v84
    %v89 = vcvt.s32.f32 %v85
    %v90 = vcvt.s32.f32 %v86
    %v91 = vcvt.s32.f32 %v87
    %v92 = vpack.c.bf16 %v89, %v88
    %v93 = vpack.c.bf16 %v91, %v90
    %v94 = vld [vmem:[%s1] sm:$0xf]
    %v95 = vld [vmem:[%s1 + $0x4] sm:$0xf]
    %v96 = vld [vmem:[%s1 + $0x8] sm:$0xf]
    %v97 = vld [vmem:[%s1 + $0xc] sm:$0xf]
    %v98 = vld [vmem:[%s1 + $0x10] sm:$0xf]
    %v99 = vld [vmem:[%s1 + $0x14] sm:$0xf]
    %v100 = vld [vmem:[%s1 + $0x18] sm:$0x1]
    %v108 = vunpack.c.l.b16 %v94
    %v109 = vunpack.c.l.b16 %v95
    %v110 = vunpack.c.l.b16 %v96
    %v111 = vunpack.c.l.b16 %v97
    %v112 = vunpack.c.l.b16 %v98
    %v113 = vunpack.c.l.b16 %v99
    %v114 = vunpack.c.l.b16 %v100
    %v115 = vpack.c.b16 %v109, %v108
    %v116 = vpack.c.b16 %v111, %v110
    %v117 = vpack.c.b16 %v113, %v112
    %v118 = vpack.c.b16 %v114, %v114
    %vm122 = vcmask 408576
    %v124 = vsel %vm122, %v92, 0
    %v127 = vsel %vm122, %v93, 0
    %vm129 = vcmask 1040384
    %v131 = vsel %vm129, %v118, 0
    %133 = vmatprep.subr.bf16.mxu0 0
    %134 = vmatpush1.bf16.msra.mxu0 %v115
    %135 = vmatprep.subr.bf16.mxu0 0
    %136 = vmatpush1.bf16.msra.mxu0 %v116
    %137 = vmatprep.subr.bf16.mxu0 0
    %138 = vmatpush1.bf16.msra.mxu0 %v117
    %139 = vmatprep.subr.bf16.mxu0 0
    %140 = vmatpush1.bf16.msra.mxu0 %v131
    %141 = vmatprep.subr.bf16.mxu0 0
    %142 = vmatpush1.bf16.msra.mxu0 0
    %143 = vmatprep.subr.bf16.mxu0 0
    %144 = vmatpush1.bf16.msra.mxu0 0
    %145 = vmatprep.subr.bf16.mxu0 0
    %146 = vmatpush1.bf16.msra.mxu0 0
    %147 = vmatprep.subr.bf16.mxu0 0
    %148 = vmatpush1.bf16.msra.mxu0 0
    %149 = vmatprep.subr.bf16.mxu0 0
    %150 = vmatpush1.bf16.msra.mxu0 0
    %151 = vmatprep.subr.bf16.mxu0 0
    %152 = vmatpush1.bf16.msra.mxu0 0
    %153 = vmatprep.subr.bf16.mxu0 0
    %154 = vmatpush1.bf16.msra.mxu0 0
    %155 = vmatprep.subr.bf16.mxu0 0
    %156 = vmatpush1.bf16.msra.mxu0 0
    %157 = vmatprep.subr.bf16.mxu0 0
    %158 = vmatpush1.bf16.msra.mxu0 0
    %159 = vmatprep.subr.bf16.mxu0 0
    %160 = vmatpush1.bf16.msra.mxu0 0
    %161 = vmatprep.subr.bf16.mxu0 0
    %162 = vmatpush1.bf16.msra.mxu0 0
    %163 = vmatprep.subr.bf16.mxu0 0
    %164 = vmatpush1.bf16.msra.mxu0 0
    %165 = vmatprep.mubr.bf16.mxu0 0
    %166 = vmatmul.mubr.bf16.gmra.mrb[0].mxu0 %v124
    %v167 = vpop.f32.mrb[0].mxu0
    %v168 = vadd.f32 0.0, %v167
    %v169 = vpop.f32.mrb[0].mxu0
    %v170 = vpop.f32.mrb[0].mxu0
    %v171 = vadd.f32 0.0, %v170
    %v172 = vpop.f32.mrb[0].mxu0
    %173 = vmatprep.mubr.bf16.mxu0 0
    %174 = vmatmul.mubr.bf16.gmra.mrb[0].mxu0 %v127
    %v175 = vpop.f32.mrb[0].mxu0
    %v176 = vadd.f32 0.0, %v175
    %v177 = vpop.f32.mrb[0].mxu0
    %v178 = vpop.f32.mrb[0].mxu0
    %v179 = vpop.f32.mrb[0].mxu0
    %180 = vdwg.mxu0
    %vm184 = vcmask 1046528
    %v185 = vrot.slane %v168, 1
    %v186 = vrot.slane %v171, 1
    %v187 = vsel %vm184, %v185, %v186
    %v188 = vrot.slane %v176, 1
    %v189 = vsel %vm184, %v186, %v188
    %190 = vrot.lane.b32.xlu0 %v187, 32
    %v191 = vpop.permute.xlu0 %190
    %192 = vrot.lane.b32.xlu0 %v189, 32
    %v193 = vpop.permute.xlu0 %192
    %vm196 = vcmask 1045504
    %v197 = vrot.slane %v168, 2
    %v198 = vrot.slane %v171, 2
    %v199 = vsel %vm196, %v197, %v198
    %v200 = vrot.slane %v176, 2
    %v201 = vsel %vm196, %v198, %v200
    %202 = vrot.lane.b32.xlu0 %v199, 64
    %v203 = vpop.permute.xlu0 %202
    %204 = vrot.lane.b32.xlu0 %v201, 64
    %v205 = vpop.permute.xlu0 %204
    %vm208 = vcmask 1044480
    %v209 = vrot.slane %v168, 3
    %v210 = vrot.slane %v171, 3
    %v211 = vsel %vm208, %v209, %v210
    %v212 = vrot.slane %v176, 3
    %v213 = vsel %vm208, %v210, %v212
    %214 = vrot.lane.b32.xlu0 %v211, 96
    %v215 = vpop.permute.xlu0 %214
    %216 = vrot.lane.b32.xlu0 %v213, 96
    %v217 = vpop.permute.xlu0 %216
    %vm220 = vcmask 261120
    %v221 = vsel %vm220, %v168, %v191
    %v222 = vsel %vm220, %v171, %v193
    %vm223 = vcmask 523264
    %v224 = vsel %vm223, %v221, %v203
    %v225 = vsel %vm223, %v222, %v205
    %vm226 = vcmask 785408
    %v227 = vsel %vm226, %v224, %v215
    %v228 = vsel %vm226, %v225, %v217
    %v229 = vpack.c.bf16 %v228, %v227
    %v230 = vld [vmem:[%s2] sm:$0xf]
    %v231 = vld [vmem:[%s2 + $0x4] sm:$0xf]
    %v232 = vld [vmem:[%s2 + $0x8] sm:$0xf]
    %v233 = vld [vmem:[%s2 + $0xc] sm:$0xf]
    %v234 = vld [vmem:[%s2 + $0x10] sm:$0xf]
    %v235 = vld [vmem:[%s2 + $0x14] sm:$0xf]
    %v236 = vld [vmem:[%s2 + $0x18] sm:$0xf]
    %v237 = vld [vmem:[%s2 + $0x1c] sm:$0xf]
    %v238 = vld [vmem:[%s2 + $0x20] sm:$0xf]
    %v239 = vld [vmem:[%s2 + $0x24] sm:$0xf]
    %v240 = vld [vmem:[%s2 + $0x28] sm:$0xf]
    %v241 = vld [vmem:[%s2 + $0x2c] sm:$0xf]
    %v242 = vld [vmem:[%s2 + $0x30] sm:$0xf]
    %v243 = vld [vmem:[%s2 + $0x34] sm:$0xf]
    %v244 = vld [vmem:[%s2 + $0x38] sm:$0xf]
    %v245 = vld [vmem:[%s2 + $0x3c] sm:$0xf]
    %v246 = vld [vmem:[%s4] sm:$0xff]
    %v247 = vld [vmem:[%s4 + $0x8] sm:$0xff]
    %v264 = vunpack.c.l.b16 %v230
    %v265 = vunpack.c.l.b16 %v231
    %v266 = vunpack.c.l.b16 %v232
    %v267 = vunpack.c.l.b16 %v233
    %v268 = vunpack.c.l.b16 %v234
    %v269 = vunpack.c.l.b16 %v235
    %v270 = vunpack.c.l.b16 %v236
    %v271 = vunpack.c.l.b16 %v237
    %v272 = vunpack.c.l.b16 %v238
    %v273 = vunpack.c.l.b16 %v239
    %v274 = vunpack.c.l.b16 %v240
    %v275 = vunpack.c.l.b16 %v241
    %v276 = vunpack.c.l.b16 %v242
    %v277 = vunpack.c.l.b16 %v243
    %v278 = vunpack.c.l.b16 %v244
    %v279 = vunpack.c.l.b16 %v245
    %v280 = vpack.c.b16 %v265, %v264
    %v281 = vpack.c.b16 %v267, %v266
    %v282 = vpack.c.b16 %v269, %v268
    %v283 = vpack.c.b16 %v271, %v270
    %v284 = vpack.c.b16 %v273, %v272
    %v285 = vpack.c.b16 %v275, %v274
    %v286 = vpack.c.b16 %v277, %v276
    %v287 = vpack.c.b16 %v279, %v278
    %296 = vmatprep.subr.bf16.mxu0 0
    %297 = vmatpush1.bf16.msra.mxu0 %v280
    %298 = vmatprep.subr.bf16.mxu0 0
    %299 = vmatpush1.bf16.msra.mxu0 %v281
    %300 = vmatprep.subr.bf16.mxu0 0
    %301 = vmatpush1.bf16.msra.mxu0 %v282
    %302 = vmatprep.subr.bf16.mxu0 0
    %303 = vmatpush1.bf16.msra.mxu0 %v283
    %304 = vmatprep.subr.bf16.mxu0 0
    %305 = vmatpush1.bf16.msra.mxu0 %v284
    %306 = vmatprep.subr.bf16.mxu0 0
    %307 = vmatpush1.bf16.msra.mxu0 %v285
    %308 = vmatprep.subr.bf16.mxu0 0
    %309 = vmatpush1.bf16.msra.mxu0 %v286
    %310 = vmatprep.subr.bf16.mxu0 0
    %311 = vmatpush1.bf16.msra.mxu0 %v287
    %312 = vmatprep.subr.bf16.mxu0 0
    %313 = vmatpush1.bf16.msra.mxu0 0
    %314 = vmatprep.subr.bf16.mxu0 0
    %315 = vmatpush1.bf16.msra.mxu0 0
    %316 = vmatprep.subr.bf16.mxu0 0
    %317 = vmatpush1.bf16.msra.mxu0 0
    %318 = vmatprep.subr.bf16.mxu0 0
    %319 = vmatpush1.bf16.msra.mxu0 0
    %320 = vmatprep.subr.bf16.mxu0 0
    %321 = vmatpush1.bf16.msra.mxu0 0
    %322 = vmatprep.subr.bf16.mxu0 0
    %323 = vmatpush1.bf16.msra.mxu0 0
    %324 = vmatprep.subr.bf16.mxu0 0
    %325 = vmatpush1.bf16.msra.mxu0 0
    %326 = vmatprep.subr.bf16.mxu0 0
    %327 = vmatpush1.bf16.msra.mxu0 0
    %328 = vmatprep.mubr.bf16.mxu0 0
    %329 = vmatmul.mubr.bf16.gmra.mrb[0].mxu0 %v229
    %v330 = vpop.f32.mrb[0].mxu0
    %v331 = vadd.f32 %v246, %v330
    %v332 = vpop.f32.mrb[0].mxu0
    %v333 = vpop.f32.mrb[0].mxu0
    %v334 = vadd.f32 %v247, %v333
    %v335 = vpop.f32.mrb[0].mxu0
    %336 = vdwg.mxu0
    %v337 = vrot.slane %v331, 4
    %v338 = vmax.f32 %v331, %v337
    %v339 = vrot.slane %v338, 2
    %v340 = vmax.f32 %v338, %v339
    %v341 = vrot.slane %v340, 1
    %v342 = vmax.f32 %v340, %v341
    %v343 = vrot.slane %v334, 4
    %v344 = vmax.f32 %v334, %v343
    %v345 = vrot.slane %v344, 2
    %v346 = vmax.f32 %v344, %v345
    %v347 = vrot.slane %v346, 1
    %v348 = vmax.f32 %v346, %v347
    %v349 = vld [vmem:[%s3] sm:$0x1]
    %v351 = vlaneseq
    %v352 = vshrl.u32 %v351, 7
    %v353 = vsub.s32 0, %v352
    %v354 = vrot.slane %v349, %v353
    %v356 = vadd.f32 %v342, %v354
    %v357 = vadd.f32 %v348, %v354
    %v358 = vmax.f32 %v356, 0.0
    %v359 = vmax.f32 %v357, 0.0
    %v360 = vpack.c.bf16 %v358, %v358
    %v361 = vpack.c.bf16 %v359, %v359
    %v362 = vld [vmem:[#allocation2] sm:$0xf]
    %v363 = vld [vmem:[#allocation2 + $0x4] sm:$0xf]
    %v364 = vld [vmem:[#allocation2 + $0x8] sm:$0xf]
    %v365 = vld [vmem:[#allocation2 + $0xc] sm:$0xf]
    %v366 = vld [vmem:[#allocation2 + $0x10] sm:$0xf]
    %v367 = vld [vmem:[#allocation2 + $0x14] sm:$0xf]
    %v368 = vld [vmem:[#allocation2 + $0x18] sm:$0xf]
    %v369 = vld [vmem:[#allocation2 + $0x1c] sm:$0xf]
    %v370 = vld [vmem:[#allocation2 + $0x20] sm:$0xf]
    %v371 = vld [vmem:[#allocation2 + $0x24] sm:$0xf]
    %v372 = vld [vmem:[#allocation2 + $0x28] sm:$0xf]
    %v373 = vld [vmem:[#allocation2 + $0x2c] sm:$0xf]
    %v374 = vld [vmem:[#allocation2 + $0x30] sm:$0xf]
    %v375 = vld [vmem:[#allocation2 + $0x34] sm:$0xf]
    %v376 = vld [vmem:[#allocation2 + $0x38] sm:$0xf]
    %v377 = vld [vmem:[#allocation2 + $0x3c] sm:$0xf]
    %v378 = vld [vmem:[%s6] sm:$0x1]
    %v380 = vlaneseq
    %v381 = vshrl.u32 %v380, 7
    %v382 = vsub.s32 0, %v381
    %v383 = vrot.slane %v378, %v382
    %v387 = vunpack.c.l.b16 %v360
    %v388 = vunpack.c.l.b16 %v361
    %v389 = vrot.slane %v388, 7
    %vm390 = vcmask 1041409
    %v391 = vsel %vm390, %v389, %v387
    %v392 = vpack.c.b16 %v391, %v391
    %v410 = vunpack.c.l.b16 %v362
    %v411 = vunpack.c.l.b16 %v363
    %v412 = vunpack.c.l.b16 %v364
    %v413 = vunpack.c.l.b16 %v365
    %v414 = vunpack.c.l.b16 %v366
    %v415 = vunpack.c.l.b16 %v367
    %v416 = vunpack.c.l.b16 %v368
    %v417 = vunpack.c.l.b16 %v369
    %v418 = vunpack.c.l.b16 %v370
    %v419 = vunpack.c.l.b16 %v371
    %v420 = vunpack.c.l.b16 %v372
    %v421 = vunpack.c.l.b16 %v373
    %v422 = vunpack.c.l.b16 %v374
    %v423 = vunpack.c.l.b16 %v375
    %v424 = vunpack.c.l.b16 %v376
    %v425 = vunpack.c.l.b16 %v377
    %v426 = vpack.c.b16 %v411, %v410
    %v427 = vpack.c.b16 %v413, %v412
    %v428 = vpack.c.b16 %v415, %v414
    %v429 = vpack.c.b16 %v417, %v416
    %v430 = vpack.c.b16 %v419, %v418
    %v431 = vpack.c.b16 %v421, %v420
    %v432 = vpack.c.b16 %v423, %v422
    %v433 = vpack.c.b16 %v425, %v424
    %442 = vmatprep.subr.bf16.mxu0 0
    %443 = vmatpush1.bf16.msra.mxu0 %v426
    %444 = vmatprep.subr.bf16.mxu0 0
    %445 = vmatpush1.bf16.msra.mxu0 %v427
    %446 = vmatprep.subr.bf16.mxu0 0
    %447 = vmatpush1.bf16.msra.mxu0 %v428
    %448 = vmatprep.subr.bf16.mxu0 0
    %449 = vmatpush1.bf16.msra.mxu0 %v429
    %450 = vmatprep.subr.bf16.mxu0 0
    %451 = vmatpush1.bf16.msra.mxu0 %v430
    %452 = vmatprep.subr.bf16.mxu0 0
    %453 = vmatpush1.bf16.msra.mxu0 %v431
    %454 = vmatprep.subr.bf16.mxu0 0
    %455 = vmatpush1.bf16.msra.mxu0 %v432
    %456 = vmatprep.subr.bf16.mxu0 0
    %457 = vmatpush1.bf16.msra.mxu0 %v433
    %458 = vmatprep.subr.bf16.mxu0 0
    %459 = vmatpush1.bf16.msra.mxu0 0
    %460 = vmatprep.subr.bf16.mxu0 0
    %461 = vmatpush1.bf16.msra.mxu0 0
    %462 = vmatprep.subr.bf16.mxu0 0
    %463 = vmatpush1.bf16.msra.mxu0 0
    %464 = vmatprep.subr.bf16.mxu0 0
    %465 = vmatpush1.bf16.msra.mxu0 0
    %466 = vmatprep.subr.bf16.mxu0 0
    %467 = vmatpush1.bf16.msra.mxu0 0
    %468 = vmatprep.subr.bf16.mxu0 0
    %469 = vmatpush1.bf16.msra.mxu0 0
    %470 = vmatprep.subr.bf16.mxu0 0
    %471 = vmatpush1.bf16.msra.mxu0 0
    %472 = vmatprep.subr.bf16.mxu0 0
    %473 = vmatpush1.bf16.msra.mxu0 0
    %474 = vmatprep.mubr.bf16.mxu0 0
    %475 = vmatmul.mubr.bf16.gmra.mrb[0].mxu0 %v392
    %v476 = vpop.f32.mrb[0].mxu0
    %v477 = vadd.f32 %v383, %v476
    %v478 = vpop.f32.mrb[0].mxu0
    %v479 = vpop.f32.mrb[0].mxu0
    %v480 = vpop.f32.mrb[0].mxu0
    %481 = vdwg.mxu0
    %v482 = vmax.f32 %v477, 0.0
    %v483 = vpack.c.bf16 %v482, %v482
    %v484 = vld [vmem:[#allocation5] sm:$0xf]
    %v485 = vld [vmem:[#allocation5 + $0x4] sm:$0xf]
    %v486 = vld [vmem:[#allocation5 + $0x8] sm:$0xf]
    %v487 = vld [vmem:[#allocation5 + $0xc] sm:$0xf]
    %v488 = vld [vmem:[#allocation5 + $0x10] sm:$0xf]
    %v489 = vld [vmem:[#allocation5 + $0x14] sm:$0xf]
    %v490 = vld [vmem:[#allocation5 + $0x18] sm:$0xf]
    %v491 = vld [vmem:[#allocation5 + $0x1c] sm:$0xf]
    %v492 = vld [vmem:[#allocation5 + $0x20] sm:$0xf]
    %v493 = vld [vmem:[#allocation5 + $0x24] sm:$0xf]
    %v494 = vld [vmem:[#allocation5 + $0x28] sm:$0xf]
    %v495 = vld [vmem:[#allocation5 + $0x2c] sm:$0xf]
    %v496 = vld [vmem:[#allocation5 + $0x30] sm:$0xf]
    %v497 = vld [vmem:[#allocation5 + $0x34] sm:$0xf]
    %v498 = vld [vmem:[#allocation5 + $0x38] sm:$0xf]
    %v499 = vld [vmem:[#allocation5 + $0x3c] sm:$0xf]
    %v500 = vld [vmem:[%s8] sm:$0x1]
    %v502 = vlaneseq
    %v503 = vshrl.u32 %v502, 7
    %v504 = vsub.s32 0, %v503
    %v505 = vrot.slane %v500, %v504
    %v523 = vunpack.c.l.b16 %v484
    %v524 = vunpack.c.l.b16 %v485
    %v525 = vunpack.c.l.b16 %v486
    %v526 = vunpack.c.l.b16 %v487
    %v527 = vunpack.c.l.b16 %v488
    %v528 = vunpack.c.l.b16 %v489
    %v529 = vunpack.c.l.b16 %v490
    %v530 = vunpack.c.l.b16 %v491
    %v531 = vunpack.c.l.b16 %v492
    %v532 = vunpack.c.l.b16 %v493
    %v533 = vunpack.c.l.b16 %v494
    %v534 = vunpack.c.l.b16 %v495
    %v535 = vunpack.c.l.b16 %v496
    %v536 = vunpack.c.l.b16 %v497
    %v537 = vunpack.c.l.b16 %v498
    %v538 = vunpack.c.l.b16 %v499
    %v539 = vpack.c.b16 %v524, %v523
    %v540 = vpack.c.b16 %v526, %v525
    %v541 = vpack.c.b16 %v528, %v527
    %v542 = vpack.c.b16 %v530, %v529
    %v543 = vpack.c.b16 %v532, %v531
    %v544 = vpack.c.b16 %v534, %v533
    %v545 = vpack.c.b16 %v536, %v535
    %v546 = vpack.c.b16 %v538, %v537
    %555 = vmatprep.subr.bf16.mxu0 0
    %556 = vmatpush1.bf16.msra.mxu0 %v539
    %557 = vmatprep.subr.bf16.mxu0 0
    %558 = vmatpush1.bf16.msra.mxu0 %v540
    %559 = vmatprep.subr.bf16.mxu0 0
    %560 = vmatpush1.bf16.msra.mxu0 %v541
    %561 = vmatprep.subr.bf16.mxu0 0
    %562 = vmatpush1.bf16.msra.mxu0 %v542
    %563 = vmatprep.subr.bf16.mxu0 0
    %564 = vmatpush1.bf16.msra.mxu0 %v543
    %565 = vmatprep.subr.bf16.mxu0 0
    %566 = vmatpush1.bf16.msra.mxu0 %v544
    %567 = vmatprep.subr.bf16.mxu0 0
    %568 = vmatpush1.bf16.msra.mxu0 %v545
    %569 = vmatprep.subr.bf16.mxu0 0
    %570 = vmatpush1.bf16.msra.mxu0 %v546
    %571 = vmatprep.subr.bf16.mxu0 0
    %572 = vmatpush1.bf16.msra.mxu0 0
    %573 = vmatprep.subr.bf16.mxu0 0
    %574 = vmatpush1.bf16.msra.mxu0 0
    %575 = vmatprep.subr.bf16.mxu0 0
    %576 = vmatpush1.bf16.msra.mxu0 0
    %577 = vmatprep.subr.bf16.mxu0 0
    %578 = vmatpush1.bf16.msra.mxu0 0
    %579 = vmatprep.subr.bf16.mxu0 0
    %580 = vmatpush1.bf16.msra.mxu0 0
    %581 = vmatprep.subr.bf16.mxu0 0
    %582 = vmatpush1.bf16.msra.mxu0 0
    %583 = vmatprep.subr.bf16.mxu0 0
    %584 = vmatpush1.bf16.msra.mxu0 0
    %585 = vmatprep.subr.bf16.mxu0 0
    %586 = vmatpush1.bf16.msra.mxu0 0
    %587 = vmatprep.mubr.bf16.mxu0 0
    %588 = vmatmul.mubr.bf16.gmra.mrb[0].mxu0 %v483
    %v589 = vpop.f32.mrb[0].mxu0
    %v590 = vadd.f32 %v505, %v589
    %v591 = vpop.f32.mrb[0].mxu0
    %v592 = vpop.f32.mrb[0].mxu0
    %v593 = vpop.f32.mrb[0].mxu0
    %594 = vdwg.mxu0
    %vm595 = vcmask 1041408
    %v596 = vsel %vm595, %v590, -inf
    %597 = vmax.xlane.f32.xlu0 %v596
    %v598 = vpop.xlane.xlu0 %597
    %v599 = vsub.f32 %v590, %v598
    %v600 = vmul.f32 %v599, 1.442695
    %v601 = vpow.pop %v600
    %v602 = vsel %vm595, %v601, 0.0
    %603 = vadd.xlane.f32.xlu0 %v602
    %v604 = vpop.xlane.xlu0 %603
    %v605 = vlog2.pop %v604
    %v606 = vmul.f32 %v605, 0.6931472
    %v607 = vadd.f32 %v606, %v598
    %v608 = vsub.f32 %v590, %v607
    %609 = vst [vmem:[#allocation7] sm:$0x3] %v608
    // Predicated region
    $region46: #{tpu_custom_call.1} parent=1 // pred_check
      _
    $region47: #{tpu_custom_call.1} parent=1 // pred_check_branch
      %611 = sbr.rel (0) target = $region49
    $region48: #{tpu_custom_call.1} parent=1 // pred_region
      %s613 = ssub.s32 32, 32
      %614 = vsyncadd [#allocation4], %s613
      %s616 = sshll.u32 [#allocation7], 4
      %s617 = int_to_ptr.vmem [resolvable:$true] %s616
      %619 = dma.vmem_to_hbm [thread:$0]  %s617, 32, %s9, [#allocation4]
    $region49: #{tpu_custom_call.1} parent=1 // pred_fallthru
      _
    // Predicated region
    $region50: #{tpu_custom_call.1} parent=1 // pred_check
      _
    $region51: #{tpu_custom_call.1} parent=1 // pred_check_branch
      %621 = sbr.rel (0) target = $region53
    $region52: #{tpu_custom_call.1} parent=1 // pred_region
      %622 = dma.done [#allocation4], 32
    $region53: #{tpu_custom_call.1} parent=1 // pred_fallthru
      _
    %623 = vsyncpa [#allocation3], 1
    %624 = vsyncpa [#allocation6], 1
    %625 = vsyncpa [#allocation4], 1

</llo_original>
